<compile_context>
chip_gen: v7x
topology: tpu7x:2x2x1
jax: 0.10.0
libtpu: 0.0.40
codegen_flags: <defaults>
</compile_context>

<pallas_src>
import jax
import jax.numpy as jnp
from jax.experimental import pallas as pl
from jax.experimental.pallas import tpu as pltpu

IN_FEATURES = 1280  # fixed by the module: nn.Linear(1280, args.out_class)


def _round_up(v, mult):
    return ((v + mult - 1) // mult) * mult


def linear_kernel(x_ref, w_ref, b_ref, o_ref):
    # x (TM, K) f32, w (K, N_pad) f32 (VMEM-resident), b (1, N_pad), o (TM, N_pad)
    acc = jnp.dot(x_ref[...], w_ref[...], preferred_element_type=jnp.float32)
    o_ref[...] = (acc + b_ref[...]).astype(o_ref.dtype)


def prepare_linear_params(weight, bias):
    """One-time parameter prep (outside the per-call hot path).

    weight: (out_class, 1280) float32  -- PyTorch nn.Linear layout
    bias:   (out_class,)      float32
    returns (w_kn_padded (K, N_pad), b_padded (1, N_pad), out_class)
    """
    out_class, k = weight.shape
    n_pad = max(128, _round_up(out_class, 128))
    w_kn = jnp.zeros((k, n_pad), dtype=weight.dtype).at[:, :out_class].set(weight.T)
    b_2d = jnp.zeros((1, n_pad), dtype=bias.dtype).at[0, :out_class].set(bias)
    return w_kn, b_2d, out_class


def speech_recognition_forward(x, w_kn_padded, b_padded, out_class):
    """logits = x @ W.T + b  with W in PyTorch layout, pre-prepared as (K, N_pad)."""
    k, n_pad = w_kn_padded.shape
    lead_shape = x.shape[:-1]
    m = 1
    for d in lead_shape:
        m *= d
    x2d = x.reshape(m, k)

    # Row-tile size: 512 rows (~2.5 MiB f32 per x block, double-buffered)
    # keeps the working set well under the 16/32 MiB scoped VMEM defaults and
    # within v7x's 64 MiB physical VMEM while reaching ~85% of HBM roofline.
    TM = 512
    if m < TM:
        TM = max(8, _round_up(m, 8))          # sublane-aligned small-M tile
    m_pad = _round_up(m, TM)
    if m_pad != m:
        x2d = jnp.zeros((m_pad, k), dtype=x2d.dtype).at[:m, :].set(x2d)

    grid = (m_pad // TM,)

    out2d = pl.pallas_call(
        linear_kernel,
        out_shape=jax.ShapeDtypeStruct((m_pad, n_pad), x.dtype),
        grid=grid,
        in_specs=[
            pl.BlockSpec((TM, k), lambda i: (i, 0)),       # x tile: streams over M
            pl.BlockSpec((k, n_pad), lambda i: (0, 0)),    # weight: VMEM-resident
            pl.BlockSpec((1, n_pad), lambda i: (0, 0)),    # bias:   VMEM-resident
        ],
        out_specs=pl.BlockSpec((TM, n_pad), lambda i: (i, 0)),
        compiler_params=pltpu.CompilerParams(
            dimension_semantics=("parallel",),             # rows independent -> megacore on v7x
            vmem_limit_bytes=32 * 1024 * 1024,
        ),
    )(x2d, w_kn_padded, b_padded)

    return out2d[:m, :out_class].reshape(*lead_shape, out_class)


if __name__ == "__main__":
    key = jax.random.PRNGKey(0)
    k_x, k_w, k_b = jax.random.split(key, 3)

    B, T = 2, 8
    OUT_CLASS = 32  # args.out_class (synthetic choice)

    # Deterministic synthetic parameters (not a checkpoint load)
    x = jax.random.normal(k_x, (B, T, IN_FEATURES), dtype=jnp.float32)
    weight = jax.random.normal(k_w, (OUT_CLASS, IN_FEATURES), dtype=jnp.float32) * 0.02
    bias = jax.random.normal(k_b, (OUT_CLASS,), dtype=jnp.float32) * 0.02

    w_kn_padded, b_padded, out_class = prepare_linear_params(weight, bias)
    logits = speech_recognition_forward(x, w_kn_padded, b_padded, out_class)
    jax.block_until_ready(logits)

    # Cross-check against plain JAX reference
    ref = x @ weight.T + bias
    assert logits.shape == (B, T, OUT_CLASS)
    assert jnp.allclose(logits, ref, atol=1e-4, rtol=1e-4)

    print("KERNEL_OK")
</pallas_src>

<mosaic_0001>
module attributes {stable_mosaic.version = 11 : i64} {
  func.func @linear_kernel(%arg0: i32, %arg1: memref<16x1280xf32, #tpu.memory_space<vmem>>, %arg2: memref<1280x128xf32, #tpu.memory_space<vmem>>, %arg3: memref<1x128xf32, #tpu.memory_space<vmem>>, %arg4: memref<16x128xf32, #tpu.memory_space<vmem>>) attributes {dimension_semantics = [#tpu.dimension_semantics<parallel>], iteration_bounds = array<i64: 1>, scalar_prefetch = 0 : i64, scratch_operands = 0 : i64, tpu.core_type = #tpu.core_type<tc>, window_params = [{transform_indices = @transform_0, window_bounds = array<i64: 16, 1280>}, {pipeline_mode = #tpu.pipeline_mode<synchronous>, transform_indices = @transform_1, window_bounds = array<i64: 1280, 128>}, {pipeline_mode = #tpu.pipeline_mode<synchronous>, transform_indices = @transform_2, window_bounds = array<i64: 1, 128>}, {transform_indices = @transform_3, window_bounds = array<i64: 16, 128>}]} {
    %c0 = arith.constant 0 : index
    %c0_0 = arith.constant 0 : index
    %0 = vector.load %arg1[%c0, %c0_0] : memref<16x1280xf32, #tpu.memory_space<vmem>>, vector<16x1280xf32>
    %c0_1 = arith.constant 0 : index
    %c0_2 = arith.constant 0 : index
    %1 = vector.load %arg2[%c0_1, %c0_2] : memref<1280x128xf32, #tpu.memory_space<vmem>>, vector<1280x128xf32>
    %cst = arith.constant dense<0.000000e+00> : vector<16x128xf32>
    %2 = tpu.matmul %0, %1, %cst {dimension_numbers = #tpu.dot_dimension_numbers<[1], [0], [0], [1], [0, 0, 1, 1], [], []>} : vector<16x1280xf32>, vector<1280x128xf32>, vector<16x128xf32> -> vector<16x128xf32>
    %c0_3 = arith.constant 0 : index
    %c0_4 = arith.constant 0 : index
    %3 = vector.load %arg3[%c0_3, %c0_4] : memref<1x128xf32, #tpu.memory_space<vmem>>, vector<1x128xf32>
    %4 = vector.broadcast %3 : vector<1x128xf32> to vector<16x128xf32>
    %5 = arith.addf %2, %4 : vector<16x128xf32>
    %c0_5 = arith.constant 0 : index
    %c0_6 = arith.constant 0 : index
    %6 = vector.load %arg4[%c0_5, %c0_6] : memref<16x128xf32, #tpu.memory_space<vmem>>, vector<16x128xf32>
    tpu.vector_store %arg4[%c0_5, %c0_6], %5 {strides = array<i32>} : memref<16x128xf32, #tpu.memory_space<vmem>>, vector<16x128xf32>,
    return
  }
  func.func @transform_0(%arg0: i32) -> (i32, i32) {
    %c0_i32 = arith.constant 0 : i32
    %c0_i32_0 = arith.constant 0 : i32
    return %arg0, %c0_i32 : i32, i32
  }
  func.func @transform_1(%arg0: i32) -> (i32, i32) {
    %c0_i32 = arith.constant 0 : i32
    %c0_i32_0 = arith.constant 0 : i32
    %c0_i32_1 = arith.constant 0 : i32
    return %c0_i32, %c0_i32_0 : i32, i32
  }
  func.func @transform_2(%arg0: i32) -> (i32, i32) {
    %c0_i32 = arith.constant 0 : i32
    %c0_i32_0 = arith.constant 0 : i32
    %c0_i32_1 = arith.constant 0 : i32
    return %c0_i32, %c0_i32_0 : i32, i32
  }
  func.func @transform_3(%arg0: i32) -> (i32, i32) {
    %c0_i32 = arith.constant 0 : i32
    %c0_i32_0 = arith.constant 0 : i32
    return %arg0, %c0_i32 : i32, i32
  }
}

</mosaic_0001>

<llo_original>
// kernel: tpu_custom_call.1
$region0: #{tpu_custom_call.1}
  #allocation0 [shape = 'u32[]', space=smem, size = 0x4, offset = 0x4, fixed_abs, tag = 'smem constant byte address 0x4 - core index']
  #allocation1 [shape = 'u32[144,128]{1,0:T(1,128)}', space=vmem, size = 0x12000, scoped, tag = 'internal scratch']
  %s0 = inlined_call_operand.hbm [shape: f32[16,1280], index: 0, kind: input, shape index: {}]
  %s1 = inlined_call_operand.hbm [shape: f32[1280,128], index: 1, kind: input, shape index: {}]
  %s2 = inlined_call_operand.vmem [shape: f32[1,128], index: 2, kind: input, shape index: {}]
  %s3 = inlined_call_operand.hbm [shape: f32[16,128], index: 3, kind: output, shape index: {}]
  %s4 = sld [smem:[#allocation0]]
  $region30: #{tpu_custom_call.1} parent=0
    _
  %s6 = ssub.s32 1, %s4
  %s7 = scalar_select 0, %s6, %s4
  $region1: #{tpu_custom_call.1} parent=0
    #allocation2 [shape = 'u8[81920]{0}', space=vmem, size = 0x14000, scoped, tag = 'input window, operand 0, single buffered']
    #allocation3 [shape = 's32[1]{0}', space=sflag, size = 0x4, scoped, tag = 'scoped memory for tpu_custom_call.1']
    #allocation4 [shape = 's32[1]{0}', space=sflag, size = 0x4, scoped, tag = 'scoped memory for tpu_custom_call.1']
    #allocation5 [shape = 'u8[655360]{0}', space=vmem, size = 0xa0000, scoped, tag = 'input window, operand 1, single buffered']
    #allocation6 [shape = 's32[1]{0}', space=sflag, size = 0x4, scoped, tag = 'scoped memory for tpu_custom_call.1']
    #allocation7 [shape = 'u8[8192]{0}', space=vmem, size = 0x2000, scoped, tag = 'output window, operand 0, single buffered']
    %8 = vsyncpa [#allocation3], 0
    %9 = vsyncpa [#allocation6], 0
    %10 = vsyncpa [#allocation4], 0
    // Predicated region
    $region2: #{tpu_custom_call.1} parent=1 // pred_check
      _
    $region3: #{tpu_custom_call.1} parent=1 // pred_check_branch
      %12 = sbr.rel (0) target = $region5
    $region4: #{tpu_custom_call.1} parent=1 // pred_region
      %s14 = ssub.s32 2560, 2560
      %15 = vsyncadd [#allocation3], %s14
      %s16 = sshll.u32 [#allocation2], 4
      %s17 = int_to_ptr.vmem [resolvable:$true] %s16
      %22 = dma.hbm_to_vmem [thread:$0]  %s0, 2560, %s17, [#allocation3], 1280, 1280, 80
    $region5: #{tpu_custom_call.1} parent=1 // pred_fallthru
      _
    // Predicated region
    $region6: #{tpu_custom_call.1} parent=1 // pred_check
      _
    $region7: #{tpu_custom_call.1} parent=1 // pred_check_branch
      %24 = sbr.rel (0) target = $region9
    $region8: #{tpu_custom_call.1} parent=1 // pred_region
      %s26 = ssub.s32 20480, 20480
      %27 = vsyncadd [#allocation6], %s26
      %s28 = sshll.u32 [#allocation5], 4
      %s29 = int_to_ptr.vmem [resolvable:$true] %s28
      %34 = dma.hbm_to_vmem [thread:$0]  %s1, 20480, %s29, [#allocation6], 128, 128, 8
    $region9: #{tpu_custom_call.1} parent=1 // pred_fallthru
      _
    // Predicated region
    $region10: #{tpu_custom_call.1} parent=1 // pred_check
      _
    $region11: #{tpu_custom_call.1} parent=1 // pred_check_branch
      %36 = sbr.rel (0) target = $region13
    $region12: #{tpu_custom_call.1} parent=1 // pred_region
      _
    $region13: #{tpu_custom_call.1} parent=1 // pred_fallthru
      _
    // Predicated region
    $region14: #{tpu_custom_call.1} parent=1 // pred_check
      _
    $region15: #{tpu_custom_call.1} parent=1 // pred_check_branch
      %38 = sbr.rel (0) target = $region17
    $region16: #{tpu_custom_call.1} parent=1 // pred_region
      %39 = dma.done [#allocation3], 2560
    $region17: #{tpu_custom_call.1} parent=1 // pred_fallthru
      _
    // Predicated region
    $region18: #{tpu_custom_call.1} parent=1 // pred_check
      _
    $region19: #{tpu_custom_call.1} parent=1 // pred_check_branch
      %41 = sbr.rel (0) target = $region21
    $region20: #{tpu_custom_call.1} parent=1 // pred_region
      %42 = dma.done [#allocation6], 20480
    $region21: #{tpu_custom_call.1} parent=1 // pred_fallthru
      _
    %v43 = vld [vmem:[#allocation2] sm:$0xff]
    %v44 = vld [vmem:[#allocation2 + $0x8] sm:$0xff]
    %v45 = vld [vmem:[#allocation2 + $0x10] sm:$0xff]
    %v46 = vld [vmem:[#allocation2 + $0x18] sm:$0xff]
    %v47 = vld [vmem:[#allocation2 + $0x20] sm:$0xff]
    %v48 = vld [vmem:[#allocation2 + $0x28] sm:$0xff]
    %v49 = vld [vmem:[#allocation2 + $0x30] sm:$0xff]
    %v50 = vld [vmem:[#allocation2 + $0x38] sm:$0xff]
    %v51 = vld [vmem:[#allocation2 + $0x40] sm:$0xff]
    %v52 = vld [vmem:[#allocation2 + $0x48] sm:$0xff]
    %v53 = vld [vmem:[#allocation2 + $0x50] sm:$0xff]
    %v54 = vld [vmem:[#allocation2 + $0x58] sm:$0xff]
    %v55 = vld [vmem:[#allocation2 + $0x60] sm:$0xff]
    %v56 = vld [vmem:[#allocation2 + $0x68] sm:$0xff]
    %v57 = vld [vmem:[#allocation2 + $0x70] sm:$0xff]
    %v58 = vld [vmem:[#allocation2 + $0x78] sm:$0xff]
    %v59 = vld [vmem:[#allocation2 + $0x80] sm:$0xff]
    %v60 = vld [vmem:[#allocation2 + $0x88] sm:$0xff]
    %v61 = vld [vmem:[#allocation2 + $0x90] sm:$0xff]
    %v62 = vld [vmem:[#allocation2 + $0x98] sm:$0xff]
    %v63 = vld [vmem:[#allocation5] sm:$0xff]
    %v64 = vld [vmem:[#allocation5 + $0x8] sm:$0xff]
    %v65 = vld [vmem:[#allocation5 + $0x10] sm:$0xff]
    %v66 = vld [vmem:[#allocation5 + $0x18] sm:$0xff]
    %v67 = vld [vmem:[#allocation5 + $0x20] sm:$0xff]
    %v68 = vld [vmem:[#allocation5 + $0x28] sm:$0xff]
    %v69 = vld [vmem:[#allocation5 + $0x30] sm:$0xff]
    %v70 = vld [vmem:[#allocation5 + $0x38] sm:$0xff]
    %v71 = vld [vmem:[#allocation5 + $0x40] sm:$0xff]
    %v72 = vld [vmem:[#allocation5 + $0x48] sm:$0xff]
    %v73 = vld [vmem:[#allocation5 + $0x50] sm:$0xff]
    %v74 = vld [vmem:[#allocation5 + $0x58] sm:$0xff]
    %v75 = vld [vmem:[#allocation5 + $0x60] sm:$0xff]
    %v76 = vld [vmem:[#allocation5 + $0x68] sm:$0xff]
    %v77 = vld [vmem:[#allocation5 + $0x70] sm:$0xff]
    %v78 = vld [vmem:[#allocation5 + $0x78] sm:$0xff]
    %v79 = vld [vmem:[#allocation5 + $0x80] sm:$0xff]
    %v80 = vld [vmem:[#allocation5 + $0x88] sm:$0xff]
    %v81 = vld [vmem:[#allocation5 + $0x90] sm:$0xff]
    %v82 = vld [vmem:[#allocation5 + $0x98] sm:$0xff]
    %v83 = vld [vmem:[#allocation5 + $0xa0] sm:$0xff]
    %v84 = vld [vmem:[#allocation5 + $0xa8] sm:$0xff]
    %v85 = vld [vmem:[#allocation5 + $0xb0] sm:$0xff]
    %v86 = vld [vmem:[#allocation5 + $0xb8] sm:$0xff]
    %v87 = vld [vmem:[#allocation5 + $0xc0] sm:$0xff]
    %v88 = vld [vmem:[#allocation5 + $0xc8] sm:$0xff]
    %v89 = vld [vmem:[#allocation5 + $0xd0] sm:$0xff]
    %v90 = vld [vmem:[#allocation5 + $0xd8] sm:$0xff]
    %v91 = vld [vmem:[#allocation5 + $0xe0] sm:$0xff]
    %v92 = vld [vmem:[#allocation5 + $0xe8] sm:$0xff]
    %v93 = vld [vmem:[#allocation5 + $0xf0] sm:$0xff]
    %v94 = vld [vmem:[#allocation5 + $0xf8] sm:$0xff]
    %v95 = vld [vmem:[#allocation5 + $0x100] sm:$0xff]
    %v96 = vld [vmem:[#allocation5 + $0x108] sm:$0xff]
    %v97 = vld [vmem:[#allocation5 + $0x110] sm:$0xff]
    %v98 = vld [vmem:[#allocation5 + $0x118] sm:$0xff]
    %v99 = vld [vmem:[#allocation5 + $0x120] sm:$0xff]
    %v100 = vld [vmem:[#allocation5 + $0x128] sm:$0xff]
    %v101 = vld [vmem:[#allocation5 + $0x130] sm:$0xff]
    %v102 = vld [vmem:[#allocation5 + $0x138] sm:$0xff]
    %v103 = vld [vmem:[#allocation5 + $0x140] sm:$0xff]
    %v104 = vld [vmem:[#allocation5 + $0x148] sm:$0xff]
    %v105 = vld [vmem:[#allocation5 + $0x150] sm:$0xff]
    %v106 = vld [vmem:[#allocation5 + $0x158] sm:$0xff]
    %v107 = vld [vmem:[#allocation5 + $0x160] sm:$0xff]
    %v108 = vld [vmem:[#allocation5 + $0x168] sm:$0xff]
    %v109 = vld [vmem:[#allocation5 + $0x170] sm:$0xff]
    %v110 = vld [vmem:[#allocation5 + $0x178] sm:$0xff]
    %v111 = vld [vmem:[#allocation5 + $0x180] sm:$0xff]
    %v112 = vld [vmem:[#allocation5 + $0x188] sm:$0xff]
    %v113 = vld [vmem:[#allocation5 + $0x190] sm:$0xff]
    %v114 = vld [vmem:[#allocation5 + $0x198] sm:$0xff]
    %v115 = vld [vmem:[#allocation5 + $0x1a0] sm:$0xff]
    %v116 = vld [vmem:[#allocation5 + $0x1a8] sm:$0xff]
    %v117 = vld [vmem:[#allocation5 + $0x1b0] sm:$0xff]
    %v118 = vld [vmem:[#allocation5 + $0x1b8] sm:$0xff]
    %v119 = vld [vmem:[#allocation5 + $0x1c0] sm:$0xff]
    %v120 = vld [vmem:[#allocation5 + $0x1c8] sm:$0xff]
    %v121 = vld [vmem:[#allocation5 + $0x1d0] sm:$0xff]
    %v122 = vld [vmem:[#allocation5 + $0x1d8] sm:$0xff]
    %v123 = vld [vmem:[#allocation5 + $0x1e0] sm:$0xff]
    %v124 = vld [vmem:[#allocation5 + $0x1e8] sm:$0xff]
    %v125 = vld [vmem:[#allocation5 + $0x1f0] sm:$0xff]
    %v126 = vld [vmem:[#allocation5 + $0x1f8] sm:$0xff]
    %v127 = vld [vmem:[#allocation5 + $0x200] sm:$0xff]
    %v128 = vld [vmem:[#allocation5 + $0x208] sm:$0xff]
    %v129 = vld [vmem:[#allocation5 + $0x210] sm:$0xff]
    %v130 = vld [vmem:[#allocation5 + $0x218] sm:$0xff]
    %v131 = vld [vmem:[#allocation5 + $0x220] sm:$0xff]
    %v132 = vld [vmem:[#allocation5 + $0x228] sm:$0xff]
    %v133 = vld [vmem:[#allocation5 + $0x230] sm:$0xff]
    %v134 = vld [vmem:[#allocation5 + $0x238] sm:$0xff]
    %v135 = vld [vmem:[#allocation5 + $0x240] sm:$0xff]
    %v136 = vld [vmem:[#allocation5 + $0x248] sm:$0xff]
    %v137 = vld [vmem:[#allocation5 + $0x250] sm:$0xff]
    %v138 = vld [vmem:[#allocation5 + $0x258] sm:$0xff]
    %v139 = vld [vmem:[#allocation5 + $0x260] sm:$0xff]
    %v140 = vld [vmem:[#allocation5 + $0x268] sm:$0xff]
    %v141 = vld [vmem:[#allocation5 + $0x270] sm:$0xff]
    %v142 = vld [vmem:[#allocation5 + $0x278] sm:$0xff]
    %v143 = vld [vmem:[#allocation5 + $0x280] sm:$0xff]
    %v144 = vld [vmem:[#allocation5 + $0x288] sm:$0xff]
    %v145 = vld [vmem:[#allocation5 + $0x290] sm:$0xff]
    %v146 = vld [vmem:[#allocation5 + $0x298] sm:$0xff]
    %v147 = vld [vmem:[#allocation5 + $0x2a0] sm:$0xff]
    %v148 = vld [vmem:[#allocation5 + $0x2a8] sm:$0xff]
    %v149 = vld [vmem:[#allocation5 + $0x2b0] sm:$0xff]
    %v150 = vld [vmem:[#allocation5 + $0x2b8] sm:$0xff]
    %v151 = vld [vmem:[#allocation5 + $0x2c0] sm:$0xff]
    %v152 = vld [vmem:[#allocation5 + $0x2c8] sm:$0xff]
    %v153 = vld [vmem:[#allocation5 + $0x2d0] sm:$0xff]
    %v154 = vld [vmem:[#allocation5 + $0x2d8] sm:$0xff]
    %v155 = vld [vmem:[#allocation5 + $0x2e0] sm:$0xff]
    %v156 = vld [vmem:[#allocation5 + $0x2e8] sm:$0xff]
    %v157 = vld [vmem:[#allocation5 + $0x2f0] sm:$0xff]
    %v158 = vld [vmem:[#allocation5 + $0x2f8] sm:$0xff]
    %v159 = vld [vmem:[#allocation5 + $0x300] sm:$0xff]
    %v160 = vld [vmem:[#allocation5 + $0x308] sm:$0xff]
    %v161 = vld [vmem:[#allocation5 + $0x310] sm:$0xff]
    %v162 = vld [vmem:[#allocation5 + $0x318] sm:$0xff]
    %v163 = vld [vmem:[#allocation5 + $0x320] sm:$0xff]
    %v164 = vld [vmem:[#allocation5 + $0x328] sm:$0xff]
    %v165 = vld [vmem:[#allocation5 + $0x330] sm:$0xff]
    %v166 = vld [vmem:[#allocation5 + $0x338] sm:$0xff]
    %v167 = vld [vmem:[#allocation5 + $0x340] sm:$0xff]
    %v168 = vld [vmem:[#allocation5 + $0x348] sm:$0xff]
    %v169 = vld [vmem:[#allocation5 + $0x350] sm:$0xff]
    %v170 = vld [vmem:[#allocation5 + $0x358] sm:$0xff]
    %v171 = vld [vmem:[#allocation5 + $0x360] sm:$0xff]
    %v172 = vld [vmem:[#allocation5 + $0x368] sm:$0xff]
    %v173 = vld [vmem:[#allocation5 + $0x370] sm:$0xff]
    %v174 = vld [vmem:[#allocation5 + $0x378] sm:$0xff]
    %v175 = vld [vmem:[#allocation5 + $0x380] sm:$0xff]
    %v176 = vld [vmem:[#allocation5 + $0x388] sm:$0xff]
    %v177 = vld [vmem:[#allocation5 + $0x390] sm:$0xff]
    %v178 = vld [vmem:[#allocation5 + $0x398] sm:$0xff]
    %v179 = vld [vmem:[#allocation5 + $0x3a0] sm:$0xff]
    %v180 = vld [vmem:[#allocation5 + $0x3a8] sm:$0xff]
    %v181 = vld [vmem:[#allocation5 + $0x3b0] sm:$0xff]
    %v182 = vld [vmem:[#allocation5 + $0x3b8] sm:$0xff]
    %v183 = vld [vmem:[#allocation5 + $0x3c0] sm:$0xff]
    %v184 = vld [vmem:[#allocation5 + $0x3c8] sm:$0xff]
    %v185 = vld [vmem:[#allocation5 + $0x3d0] sm:$0xff]
    %v186 = vld [vmem:[#allocation5 + $0x3d8] sm:$0xff]
    %v187 = vld [vmem:[#allocation5 + $0x3e0] sm:$0xff]
    %v188 = vld [vmem:[#allocation5 + $0x3e8] sm:$0xff]
    %v189 = vld [vmem:[#allocation5 + $0x3f0] sm:$0xff]
    %v190 = vld [vmem:[#allocation5 + $0x3f8] sm:$0xff]
    %v191 = vld [vmem:[#allocation5 + $0x400] sm:$0xff]
    %v192 = vld [vmem:[#allocation5 + $0x408] sm:$0xff]
    %v193 = vld [vmem:[#allocation5 + $0x410] sm:$0xff]
    %v194 = vld [vmem:[#allocation5 + $0x418] sm:$0xff]
    %v195 = vld [vmem:[#allocation5 + $0x420] sm:$0xff]
    %v196 = vld [vmem:[#allocation5 + $0x428] sm:$0xff]
    %v197 = vld [vmem:[#allocation5 + $0x430] sm:$0xff]
    %v198 = vld [vmem:[#allocation5 + $0x438] sm:$0xff]
    %v199 = vld [vmem:[#allocation5 + $0x440] sm:$0xff]
    %v200 = vld [vmem:[#allocation5 + $0x448] sm:$0xff]
    %v201 = vld [vmem:[#allocation5 + $0x450] sm:$0xff]
    %v202 = vld [vmem:[#allocation5 + $0x458] sm:$0xff]
    %v203 = vld [vmem:[#allocation5 + $0x460] sm:$0xff]
    %v204 = vld [vmem:[#allocation5 + $0x468] sm:$0xff]
    %v205 = vld [vmem:[#allocation5 + $0x470] sm:$0xff]
    %v206 = vld [vmem:[#allocation5 + $0x478] sm:$0xff]
    %v207 = vld [vmem:[#allocation5 + $0x480] sm:$0xff]
    %v208 = vld [vmem:[#allocation5 + $0x488] sm:$0xff]
    %v209 = vld [vmem:[#allocation5 + $0x490] sm:$0xff]
    %v210 = vld [vmem:[#allocation5 + $0x498] sm:$0xff]
    %v211 = vld [vmem:[#allocation5 + $0x4a0] sm:$0xff]
    %v212 = vld [vmem:[#allocation5 + $0x4a8] sm:$0xff]
    %v213 = vld [vmem:[#allocation5 + $0x4b0] sm:$0xff]
    %v214 = vld [vmem:[#allocation5 + $0x4b8] sm:$0xff]
    %v215 = vld [vmem:[#allocation5 + $0x4c0] sm:$0xff]
    %v216 = vld [vmem:[#allocation5 + $0x4c8] sm:$0xff]
    %v217 = vld [vmem:[#allocation5 + $0x4d0] sm:$0xff]
    %v218 = vld [vmem:[#allocation5 + $0x4d8] sm:$0xff]
    %v219 = vld [vmem:[#allocation5 + $0x4e0] sm:$0xff]
    %v220 = vld [vmem:[#allocation5 + $0x4e8] sm:$0xff]
    %v221 = vld [vmem:[#allocation5 + $0x4f0] sm:$0xff]
    %v222 = vld [vmem:[#allocation5 + $0x4f8] sm:$0xff]
    %v223 = vld [vmem:[%s2] sm:$0x1]
    %v225 = vlaneseq
    %v226 = vshrl.u32 %v225, 7
    %v227 = vsub.s32 0, %v226
    %v228 = vrot.slane %v223, %v227
    %230 = vmatprep.subr.mxu0 0.0
    %231 = vmatpush1.msra.mxu0 %v63
    %232 = vmatprep.subr.mxu0 0.0
    %233 = vmatpush1.msra.mxu0 %v64
    %234 = vmatprep.subr.mxu0 0.0
    %235 = vmatpush1.msra.mxu0 %v65
    %236 = vmatprep.subr.mxu0 0.0
    %237 = vmatpush1.msra.mxu0 %v66
    %238 = vmatprep.subr.mxu0 0.0
    %239 = vmatpush1.msra.mxu0 %v67
    %240 = vmatprep.subr.mxu0 0.0
    %241 = vmatpush1.msra.mxu0 %v68
    %242 = vmatprep.subr.mxu0 0.0
    %243 = vmatpush1.msra.mxu0 %v69
    %244 = vmatprep.subr.mxu0 0.0
    %245 = vmatpush1.msra.mxu0 %v70
    %246 = vmatprep.subr.mxu0 0.0
    %247 = vmatpush1.msra.mxu0 %v71
    %248 = vmatprep.subr.mxu0 0.0
    %249 = vmatpush1.msra.mxu0 %v72
    %250 = vmatprep.subr.mxu0 0.0
    %251 = vmatpush1.msra.mxu0 %v73
    %252 = vmatprep.subr.mxu0 0.0
    %253 = vmatpush1.msra.mxu0 %v74
    %254 = vmatprep.subr.mxu0 0.0
    %255 = vmatpush1.msra.mxu0 %v75
    %256 = vmatprep.subr.mxu0 0.0
    %257 = vmatpush1.msra.mxu0 %v76
    %258 = vmatprep.subr.mxu0 0.0
    %259 = vmatpush1.msra.mxu0 %v77
    %260 = vmatprep.subr.mxu0 0.0
    %261 = vmatpush1.msra.mxu0 %v78
    %262 = vmatprep.subr.mxu0 0.0
    %263 = vmatpush1.msra.mxu0 %v79
    %264 = vmatprep.subr.mxu0 0.0
    %265 = vmatpush1.msra.mxu0 %v80
    %266 = vmatprep.subr.mxu0 0.0
    %267 = vmatpush1.msra.mxu0 %v81
    %268 = vmatprep.subr.mxu0 0.0
    %269 = vmatpush1.msra.mxu0 %v82
    %270 = vmatprep.subr.mxu0 0.0
    %271 = vmatpush1.msra.mxu0 %v83
    %272 = vmatprep.subr.mxu0 0.0
    %273 = vmatpush1.msra.mxu0 %v84
    %274 = vmatprep.subr.mxu0 0.0
    %275 = vmatpush1.msra.mxu0 %v85
    %276 = vmatprep.subr.mxu0 0.0
    %277 = vmatpush1.msra.mxu0 %v86
    %278 = vmatprep.subr.mxu0 0.0
    %279 = vmatpush1.msra.mxu0 %v87
    %280 = vmatprep.subr.mxu0 0.0
    %281 = vmatpush1.msra.mxu0 %v88
    %282 = vmatprep.subr.mxu0 0.0
    %283 = vmatpush1.msra.mxu0 %v89
    %284 = vmatprep.subr.mxu0 0.0
    %285 = vmatpush1.msra.mxu0 %v90
    %286 = vmatprep.subr.mxu0 0.0
    %287 = vmatpush1.msra.mxu0 %v91
    %288 = vmatprep.subr.mxu0 0.0
    %289 = vmatpush1.msra.mxu0 %v92
    %290 = vmatprep.subr.mxu0 0.0
    %291 = vmatpush1.msra.mxu0 %v93
    %292 = vmatprep.subr.mxu0 0.0
    %293 = vmatpush1.msra.mxu0 %v94
    %294 = vmatprep.mubr.f32.mxu0 %v44
    %295 = vmatmul.mubr.f32.gmra.mrb[0].mxu0 %v43
    %v296 = vpop.f32.mrb[0].mxu0
    %v297 = vadd.f32 %v228, %v296
    %v298 = vpop.f32.mrb[0].mxu0
    %299 = vmatprep.mubr.f32.mxu0 %v54
    %300 = vmatmul.mubr.f32.gmra.mrb[0].mxu0 %v53
    %v301 = vpop.f32.mrb[0].mxu0
    %v302 = vadd.f32 %v228, %v301
    %v303 = vpop.f32.mrb[0].mxu0
    %304 = vdwg.mxu0
    %305 = vmatprep.subr.mxu0 0.0
    %306 = vmatpush1.msra.mxu0 %v95
    %307 = vmatprep.subr.mxu0 0.0
    %308 = vmatpush1.msra.mxu0 %v96
    %309 = vmatprep.subr.mxu0 0.0
    %310 = vmatpush1.msra.mxu0 %v97
    %311 = vmatprep.subr.mxu0 0.0
    %312 = vmatpush1.msra.mxu0 %v98
    %313 = vmatprep.subr.mxu0 0.0
    %314 = vmatpush1.msra.mxu0 %v99
    %315 = vmatprep.subr.mxu0 0.0
    %316 = vmatpush1.msra.mxu0 %v100
    %317 = vmatprep.subr.mxu0 0.0
    %318 = vmatpush1.msra.mxu0 %v101
    %319 = vmatprep.subr.mxu0 0.0
    %320 = vmatpush1.msra.mxu0 %v102
    %321 = vmatprep.subr.mxu0 0.0
    %322 = vmatpush1.msra.mxu0 %v103
    %323 = vmatprep.subr.mxu0 0.0
    %324 = vmatpush1.msra.mxu0 %v104
    %325 = vmatprep.subr.mxu0 0.0
    %326 = vmatpush1.msra.mxu0 %v105
    %327 = vmatprep.subr.mxu0 0.0
    %328 = vmatpush1.msra.mxu0 %v106
    %329 = vmatprep.subr.mxu0 0.0
    %330 = vmatpush1.msra.mxu0 %v107
    %331 = vmatprep.subr.mxu0 0.0
    %332 = vmatpush1.msra.mxu0 %v108
    %333 = vmatprep.subr.mxu0 0.0
    %334 = vmatpush1.msra.mxu0 %v109
    %335 = vmatprep.subr.mxu0 0.0
    %336 = vmatpush1.msra.mxu0 %v110
    %337 = vmatprep.subr.mxu0 0.0
    %338 = vmatpush1.msra.mxu0 %v111
    %339 = vmatprep.subr.mxu0 0.0
    %340 = vmatpush1.msra.mxu0 %v112
    %341 = vmatprep.subr.mxu0 0.0
    %342 = vmatpush1.msra.mxu0 %v113
    %343 = vmatprep.subr.mxu0 0.0
    %344 = vmatpush1.msra.mxu0 %v114
    %345 = vmatprep.subr.mxu0 0.0
    %346 = vmatpush1.msra.mxu0 %v115
    %347 = vmatprep.subr.mxu0 0.0
    %348 = vmatpush1.msra.mxu0 %v116
    %349 = vmatprep.subr.mxu0 0.0
    %350 = vmatpush1.msra.mxu0 %v117
    %351 = vmatprep.subr.mxu0 0.0
    %352 = vmatpush1.msra.mxu0 %v118
    %353 = vmatprep.subr.mxu0 0.0
    %354 = vmatpush1.msra.mxu0 %v119
    %355 = vmatprep.subr.mxu0 0.0
    %356 = vmatpush1.msra.mxu0 %v120
    %357 = vmatprep.subr.mxu0 0.0
    %358 = vmatpush1.msra.mxu0 %v121
    %359 = vmatprep.subr.mxu0 0.0
    %360 = vmatpush1.msra.mxu0 %v122
    %361 = vmatprep.subr.mxu0 0.0
    %362 = vmatpush1.msra.mxu0 %v123
    %363 = vmatprep.subr.mxu0 0.0
    %364 = vmatpush1.msra.mxu0 %v124
    %365 = vmatprep.subr.mxu0 0.0
    %366 = vmatpush1.msra.mxu0 %v125
    %367 = vmatprep.subr.mxu0 0.0
    %368 = vmatpush1.msra.mxu0 %v126
    %369 = vmatprep.mubr.f32.mxu0 %v46
    %370 = vmatmul.mubr.f32.gmra.mrb[0].mxu0 %v45
    %v371 = vpop.f32.mrb[0].mxu0
    %v372 = vadd.f32 %v297, %v371
    %v373 = vpop.f32.mrb[0].mxu0
    %374 = vmatprep.mubr.f32.mxu0 %v56
    %375 = vmatmul.mubr.f32.gmra.mrb[0].mxu0 %v55
    %v376 = vpop.f32.mrb[0].mxu0
    %v377 = vadd.f32 %v302, %v376
    %v378 = vpop.f32.mrb[0].mxu0
    %379 = vdwg.mxu0
    %380 = vmatprep.subr.mxu0 0.0
    %381 = vmatpush1.msra.mxu0 %v127
    %382 = vmatprep.subr.mxu0 0.0
    %383 = vmatpush1.msra.mxu0 %v128
    %384 = vmatprep.subr.mxu0 0.0
    %385 = vmatpush1.msra.mxu0 %v129
    %386 = vmatprep.subr.mxu0 0.0
    %387 = vmatpush1.msra.mxu0 %v130
    %388 = vmatprep.subr.mxu0 0.0
    %389 = vmatpush1.msra.mxu0 %v131
    %390 = vmatprep.subr.mxu0 0.0
    %391 = vmatpush1.msra.mxu0 %v132
    %392 = vmatprep.subr.mxu0 0.0
    %393 = vmatpush1.msra.mxu0 %v133
    %394 = vmatprep.subr.mxu0 0.0
    %395 = vmatpush1.msra.mxu0 %v134
    %396 = vmatprep.subr.mxu0 0.0
    %397 = vmatpush1.msra.mxu0 %v135
    %398 = vmatprep.subr.mxu0 0.0
    %399 = vmatpush1.msra.mxu0 %v136
    %400 = vmatprep.subr.mxu0 0.0
    %401 = vmatpush1.msra.mxu0 %v137
    %402 = vmatprep.subr.mxu0 0.0
    %403 = vmatpush1.msra.mxu0 %v138
    %404 = vmatprep.subr.mxu0 0.0
    %405 = vmatpush1.msra.mxu0 %v139
    %406 = vmatprep.subr.mxu0 0.0
    %407 = vmatpush1.msra.mxu0 %v140
    %408 = vmatprep.subr.mxu0 0.0
    %409 = vmatpush1.msra.mxu0 %v141
    %410 = vmatprep.subr.mxu0 0.0
    %411 = vmatpush1.msra.mxu0 %v142
    %412 = vmatprep.subr.mxu0 0.0
    %413 = vmatpush1.msra.mxu0 %v143
    %414 = vmatprep.subr.mxu0 0.0
    %415 = vmatpush1.msra.mxu0 %v144
    %416 = vmatprep.subr.mxu0 0.0
    %417 = vmatpush1.msra.mxu0 %v145
    %418 = vmatprep.subr.mxu0 0.0
    %419 = vmatpush1.msra.mxu0 %v146
    %420 = vmatprep.subr.mxu0 0.0
    %421 = vmatpush1.msra.mxu0 %v147
    %422 = vmatprep.subr.mxu0 0.0
    %423 = vmatpush1.msra.mxu0 %v148
    %424 = vmatprep.subr.mxu0 0.0
    %425 = vmatpush1.msra.mxu0 %v149
    %426 = vmatprep.subr.mxu0 0.0
    %427 = vmatpush1.msra.mxu0 %v150
    %428 = vmatprep.subr.mxu0 0.0
    %429 = vmatpush1.msra.mxu0 %v151
    %430 = vmatprep.subr.mxu0 0.0
    %431 = vmatpush1.msra.mxu0 %v152
    %432 = vmatprep.subr.mxu0 0.0
    %433 = vmatpush1.msra.mxu0 %v153
    %434 = vmatprep.subr.mxu0 0.0
    %435 = vmatpush1.msra.mxu0 %v154
    %436 = vmatprep.subr.mxu0 0.0
    %437 = vmatpush1.msra.mxu0 %v155
    %438 = vmatprep.subr.mxu0 0.0
    %439 = vmatpush1.msra.mxu0 %v156
    %440 = vmatprep.subr.mxu0 0.0
    %441 = vmatpush1.msra.mxu0 %v157
    %442 = vmatprep.subr.mxu0 0.0
    %443 = vmatpush1.msra.mxu0 %v158
    %444 = vmatprep.mubr.f32.mxu0 %v48
    %445 = vmatmul.mubr.f32.gmra.mrb[0].mxu0 %v47
    %v446 = vpop.f32.mrb[0].mxu0
    %v447 = vadd.f32 %v372, %v446
    %v448 = vpop.f32.mrb[0].mxu0
    %449 = vmatprep.mubr.f32.mxu0 %v58
    %450 = vmatmul.mubr.f32.gmra.mrb[0].mxu0 %v57
    %v451 = vpop.f32.mrb[0].mxu0
    %v452 = vadd.f32 %v377, %v451
    %v453 = vpop.f32.mrb[0].mxu0
    %454 = vdwg.mxu0
    %455 = vmatprep.subr.mxu0 0.0
    %456 = vmatpush1.msra.mxu0 %v159
    %457 = vmatprep.subr.mxu0 0.0
    %458 = vmatpush1.msra.mxu0 %v160
    %459 = vmatprep.subr.mxu0 0.0
    %460 = vmatpush1.msra.mxu0 %v161
    %461 = vmatprep.subr.mxu0 0.0
    %462 = vmatpush1.msra.mxu0 %v162
    %463 = vmatprep.subr.mxu0 0.0
    %464 = vmatpush1.msra.mxu0 %v163
    %465 = vmatprep.subr.mxu0 0.0
    %466 = vmatpush1.msra.mxu0 %v164
    %467 = vmatprep.subr.mxu0 0.0
    %468 = vmatpush1.msra.mxu0 %v165
    %469 = vmatprep.subr.mxu0 0.0
    %470 = vmatpush1.msra.mxu0 %v166
    %471 = vmatprep.subr.mxu0 0.0
    %472 = vmatpush1.msra.mxu0 %v167
    %473 = vmatprep.subr.mxu0 0.0
    %474 = vmatpush1.msra.mxu0 %v168
    %475 = vmatprep.subr.mxu0 0.0
    %476 = vmatpush1.msra.mxu0 %v169
    %477 = vmatprep.subr.mxu0 0.0
    %478 = vmatpush1.msra.mxu0 %v170
    %479 = vmatprep.subr.mxu0 0.0
    %480 = vmatpush1.msra.mxu0 %v171
    %481 = vmatprep.subr.mxu0 0.0
    %482 = vmatpush1.msra.mxu0 %v172
    %483 = vmatprep.subr.mxu0 0.0
    %484 = vmatpush1.msra.mxu0 %v173
    %485 = vmatprep.subr.mxu0 0.0
    %486 = vmatpush1.msra.mxu0 %v174
    %487 = vmatprep.subr.mxu0 0.0
    %488 = vmatpush1.msra.mxu0 %v175
    %489 = vmatprep.subr.mxu0 0.0
    %490 = vmatpush1.msra.mxu0 %v176
    %491 = vmatprep.subr.mxu0 0.0
    %492 = vmatpush1.msra.mxu0 %v177
    %493 = vmatprep.subr.mxu0 0.0
    %494 = vmatpush1.msra.mxu0 %v178
    %495 = vmatprep.subr.mxu0 0.0
    %496 = vmatpush1.msra.mxu0 %v179
    %497 = vmatprep.subr.mxu0 0.0
    %498 = vmatpush1.msra.mxu0 %v180
    %499 = vmatprep.subr.mxu0 0.0
    %500 = vmatpush1.msra.mxu0 %v181
    %501 = vmatprep.subr.mxu0 0.0
    %502 = vmatpush1.msra.mxu0 %v182
    %503 = vmatprep.subr.mxu0 0.0
    %504 = vmatpush1.msra.mxu0 %v183
    %505 = vmatprep.subr.mxu0 0.0
    %506 = vmatpush1.msra.mxu0 %v184
    %507 = vmatprep.subr.mxu0 0.0
    %508 = vmatpush1.msra.mxu0 %v185
    %509 = vmatprep.subr.mxu0 0.0
    %510 = vmatpush1.msra.mxu0 %v186
    %511 = vmatprep.subr.mxu0 0.0
    %512 = vmatpush1.msra.mxu0 %v187
    %513 = vmatprep.subr.mxu0 0.0
    %514 = vmatpush1.msra.mxu0 %v188
    %515 = vmatprep.subr.mxu0 0.0
    %516 = vmatpush1.msra.mxu0 %v189
    %517 = vmatprep.subr.mxu0 0.0
    %518 = vmatpush1.msra.mxu0 %v190
    %519 = vmatprep.mubr.f32.mxu0 %v50
    %520 = vmatmul.mubr.f32.gmra.mrb[0].mxu0 %v49
    %v521 = vpop.f32.mrb[0].mxu0
    %v522 = vadd.f32 %v447, %v521
    %v523 = vpop.f32.mrb[0].mxu0
    %524 = vmatprep.mubr.f32.mxu0 %v60
    %525 = vmatmul.mubr.f32.gmra.mrb[0].mxu0 %v59
    %v526 = vpop.f32.mrb[0].mxu0
    %v527 = vadd.f32 %v452, %v526
    %v528 = vpop.f32.mrb[0].mxu0
    %529 = vdwg.mxu0
    %530 = vmatprep.subr.mxu0 0.0
    %531 = vmatpush1.msra.mxu0 %v191
    %532 = vmatprep.subr.mxu0 0.0
    %533 = vmatpush1.msra.mxu0 %v192
    %534 = vmatprep.subr.mxu0 0.0
    %535 = vmatpush1.msra.mxu0 %v193
    %536 = vmatprep.subr.mxu0 0.0
    %537 = vmatpush1.msra.mxu0 %v194
    %538 = vmatprep.subr.mxu0 0.0
    %539 = vmatpush1.msra.mxu0 %v195
    %540 = vmatprep.subr.mxu0 0.0
    %541 = vmatpush1.msra.mxu0 %v196
    %542 = vmatprep.subr.mxu0 0.0
    %543 = vmatpush1.msra.mxu0 %v197
    %544 = vmatprep.subr.mxu0 0.0
    %545 = vmatpush1.msra.mxu0 %v198
    %546 = vmatprep.subr.mxu0 0.0
    %547 = vmatpush1.msra.mxu0 %v199
    %548 = vmatprep.subr.mxu0 0.0
    %549 = vmatpush1.msra.mxu0 %v200
    %550 = vmatprep.subr.mxu0 0.0
    %551 = vmatpush1.msra.mxu0 %v201
    %552 = vmatprep.subr.mxu0 0.0
    %553 = vmatpush1.msra.mxu0 %v202
    %554 = vmatprep.subr.mxu0 0.0
    %555 = vmatpush1.msra.mxu0 %v203
    %556 = vmatprep.subr.mxu0 0.0
    %557 = vmatpush1.msra.mxu0 %v204
    %558 = vmatprep.subr.mxu0 0.0
    %559 = vmatpush1.msra.mxu0 %v205
    %560 = vmatprep.subr.mxu0 0.0
    %561 = vmatpush1.msra.mxu0 %v206
    %562 = vmatprep.subr.mxu0 0.0
    %563 = vmatpush1.msra.mxu0 %v207
    %564 = vmatprep.subr.mxu0 0.0
    %565 = vmatpush1.msra.mxu0 %v208
    %566 = vmatprep.subr.mxu0 0.0
    %567 = vmatpush1.msra.mxu0 %v209
    %568 = vmatprep.subr.mxu0 0.0
    %569 = vmatpush1.msra.mxu0 %v210
    %570 = vmatprep.subr.mxu0 0.0
    %571 = vmatpush1.msra.mxu0 %v211
    %572 = vmatprep.subr.mxu0 0.0
    %573 = vmatpush1.msra.mxu0 %v212
    %574 = vmatprep.subr.mxu0 0.0
    %575 = vmatpush1.msra.mxu0 %v213
    %576 = vmatprep.subr.mxu0 0.0
    %577 = vmatpush1.msra.mxu0 %v214
    %578 = vmatprep.subr.mxu0 0.0
    %579 = vmatpush1.msra.mxu0 %v215
    %580 = vmatprep.subr.mxu0 0.0
    %581 = vmatpush1.msra.mxu0 %v216
    %582 = vmatprep.subr.mxu0 0.0
    %583 = vmatpush1.msra.mxu0 %v217
    %584 = vmatprep.subr.mxu0 0.0
    %585 = vmatpush1.msra.mxu0 %v218
    %586 = vmatprep.subr.mxu0 0.0
    %587 = vmatpush1.msra.mxu0 %v219
    %588 = vmatprep.subr.mxu0 0.0
    %589 = vmatpush1.msra.mxu0 %v220
    %590 = vmatprep.subr.mxu0 0.0
    %591 = vmatpush1.msra.mxu0 %v221
    %592 = vmatprep.subr.mxu0 0.0
    %593 = vmatpush1.msra.mxu0 %v222
    %594 = vmatprep.mubr.f32.mxu0 %v52
    %595 = vmatmul.mubr.f32.gmra.mrb[0].mxu0 %v51
    %v596 = vpop.f32.mrb[0].mxu0
    %v597 = vadd.f32 %v522, %v596
    %v598 = vpop.f32.mrb[0].mxu0
    %599 = vmatprep.mubr.f32.mxu0 %v62
    %600 = vmatmul.mubr.f32.gmra.mrb[0].mxu0 %v61
    %v601 = vpop.f32.mrb[0].mxu0
    %v602 = vadd.f32 %v527, %v601
    %v603 = vpop.f32.mrb[0].mxu0
    %604 = vdwg.mxu0
    %605 = vst [vmem:[#allocation7] sm:$0xff] %v597
    %606 = vst [vmem:[#allocation7 + $0x8] sm:$0xff] %v602
    // Predicated region
    $region22: #{tpu_custom_call.1} parent=1 // pred_check
      _
    $region23: #{tpu_custom_call.1} parent=1 // pred_check_branch
      %608 = sbr.rel (0) target = $region25
    $region24: #{tpu_custom_call.1} parent=1 // pred_region
      %s610 = ssub.s32 256, 256
      %611 = vsyncadd [#allocation4], %s610
      %s612 = sshll.u32 [#allocation7], 4
      %s613 = int_to_ptr.vmem [resolvable:$true] %s612
      %618 = dma.vmem_to_hbm [thread:$0]  %s613, 256, %s3, [#allocation4], 128, 128, 8
    $region25: #{tpu_custom_call.1} parent=1 // pred_fallthru
      _
    // Predicated region
    $region26: #{tpu_custom_call.1} parent=1 // pred_check
      _
    $region27: #{tpu_custom_call.1} parent=1 // pred_check_branch
      %620 = sbr.rel (0) target = $region29
    $region28: #{tpu_custom_call.1} parent=1 // pred_region
      %621 = dma.done [#allocation4], 256
    $region29: #{tpu_custom_call.1} parent=1 // pred_fallthru
      _
    %622 = vsyncpa [#allocation3], 1
    %623 = vsyncpa [#allocation6], 1
    %624 = vsyncpa [#allocation4], 1

</llo_original>
